<compile_context>
chip_gen: v5e
topology: v5e:2x2
jax: 0.10.0
libtpu: 0.0.40
codegen_flags: <defaults>
</compile_context>

<pallas_src>
import functools

import jax
import jax.numpy as jnp
from jax.experimental import pallas as pl
from jax.experimental.pallas import tpu as pltpu


def _round_up(x, m):
    return ((x + m - 1) // m) * m


def _pick_spatial_tile(hw_pad, n_images):
    """Largest tile in {2048..128} dividing hw_pad; prefer an even total
    grid-step count (v7x has 2 TensorCores) with >= 2 steps."""
    candidates = (2048, 1024, 512, 256, 128)
    fallback = None
    for t in candidates:
        if hw_pad % t:
            continue
        steps = n_images * (hw_pad // t)
        if steps >= 2 and steps % 2 == 0:
            return t
        if fallback is None:
            fallback = t
    return fallback if fallback is not None else hw_pad


def multi_chain_kernel(x_ref, w0t_ref, *rest, n_levels):
    """One (image, spatial-tile) block through every chain.

    x_ref    : (1, C, t_hw)          input tile: channels on sublanes, H*W on lanes
    w0t_ref  : (NC, C)      bf16     level-0 weights of all chains (transposed, stacked)
    wbdt_ref : (L-1, NC, NC) bf16    block-diagonal transposed weights (only if L > 1)
    o_ref    : (1, NC, t_hw)         concatenated chain outputs in NCHW-out layout
    """
    if n_levels > 1:
        wbdt_ref, o_ref = rest
    else:
        (o_ref,) = rest

    x = x_ref[0].astype(jnp.bfloat16)                    # bf16 operands, f32 accum
    h = jnp.dot(w0t_ref[...], x, preferred_element_type=jnp.float32)   # (NC, t_hw)
    h = jnp.maximum(h.astype(jnp.bfloat16), 0)           # ReLU (bf16 VPU on v6e/v7x)
    for lvl in range(n_levels - 1):                      # static chain depth
        h = jnp.dot(wbdt_ref[lvl], h, preferred_element_type=jnp.float32)
        h = jnp.maximum(h.astype(jnp.bfloat16), 0)
    o_ref[0] = h.astype(o_ref.dtype)                     # single lane-dense store


def pack_weights(weights):
    """Pack per-edge 1x1-conv weights into MXU operands.

    Called once per model (weights are call-invariant) -- do NOT rebuild inside
    the per-call jit.  Returns (w0_t, wbd_t) with wbd_t = None when n_node == 1.
    """
    weights = jnp.asarray(weights)
    n_chain, n_node, c_in, c_out = weights.shape
    assert c_in == c_out, "edges are C->C 1x1 convs in this instantiation"
    w_bf = weights.astype(jnp.bfloat16)
    # Level 0: every chain reads the same input state -> one fused (NC, C) operand.
    w0_t = jnp.concatenate([w_bf[c, 0].T for c in range(n_chain)], axis=0)
    if n_node == 1:
        return w0_t, None
    # Levels >= 1: chains are independent -> block-diagonal transposed operands.
    wbd_t = jnp.stack(
        [jax.scipy.linalg.block_diag(*[w_bf[c, lvl].T for c in range(n_chain)])
         for lvl in range(1, n_node)],
        axis=0,
    ).astype(jnp.bfloat16)                               # (L-1, NC, NC)
    return w0_t, wbd_t


@functools.partial(jax.jit, static_argnames=("out_dtype",))
def multi_chain_forward_nchw(x_nchw, w0_t, wbd_t, *, out_dtype=jnp.bfloat16):
    """NCHW in, NCHW out (concatenated chain channels), no layout transposes.

    x_nchw : (N, C, H, W)   float32 or bfloat16 (pass bf16 from the producer
                            for minimum HBM traffic; no wrapper-side cast added)
    w0_t   : (NC, C)        bf16, from pack_weights
    wbd_t  : (L-1, NC, NC)  bf16, from pack_weights (or None when n_node == 1)
    """
    N, C, H, W = x_nchw.shape
    NC = w0_t.shape[0]
    n_levels = 1 if wbd_t is None else 1 + wbd_t.shape[0]

    HW = H * W
    HW_pad = _round_up(max(HW, 128), 128)
    x = x_nchw.reshape(N, C, HW)
    if HW_pad != HW:
        # Zero-padding extra spatial positions is safe: every position is
        # independent (1x1 convs); padded columns are sliced off below.
        x = jnp.pad(x, ((0, 0), (0, 0), (0, HW_pad - HW)))

    t_hw = _pick_spatial_tile(HW_pad, N)
    grid = (N, HW_pad // t_hw)

    # Explicit VMEM budget with headroom, capped at 32 MiB: v7x has only 64 MiB
    # physical VMEM per TC, and v5e's default scoped limit (16 MiB) would reject
    # the larger double-buffered tiles without an explicit override.
    in_b = jnp.dtype(x.dtype).itemsize
    out_b = jnp.dtype(out_dtype).itemsize
    w_bytes = w0_t.size * 2 + (0 if wbd_t is None else wbd_t.size * 2)
    vmem_need = 2 * C * t_hw * in_b + 2 * NC * t_hw * out_b + w_bytes
    vmem_limit = int(min(max(4 * vmem_need, 8 * 2 ** 20), 32 * 2 ** 20))

    in_specs = [
        pl.BlockSpec((1, C, t_hw), lambda n, j: (n, 0, j)),
        # Grid-invariant weights: whole-array VMEM residents, no per-step DMA.
        pl.BlockSpec(memory_space=pltpu.MemorySpace.VMEM),
    ]
    operands = [x, w0_t]
    if wbd_t is not None:
        in_specs.append(pl.BlockSpec(memory_space=pltpu.MemorySpace.VMEM))
        operands.append(wbd_t)

    out = pl.pallas_call(
        functools.partial(multi_chain_kernel, n_levels=n_levels),
        out_shape=jax.ShapeDtypeStruct((N, NC, HW_pad), out_dtype),
        grid_spec=pltpu.PrefetchScalarGridSpec(
            num_scalar_prefetch=0,
            grid=grid,
            in_specs=in_specs,
            out_specs=pl.BlockSpec((1, NC, t_hw), lambda n, j: (n, 0, j)),
        ),
        compiler_params=pltpu.CompilerParams(
            dimension_semantics=("parallel", "parallel"),
            vmem_limit_bytes=vmem_limit,
        ),
    )(*operands)

    if HW_pad != HW:
        out = out[:, :, :HW]
    return out.reshape(N, NC, H, W)


def multi_chain_reference(x_nchw, weights, out_dtype=jnp.bfloat16):
    """Plain-JAX reference mirroring MultiChainLayer.forward (same bf16-operand
    / f32-accumulate math as the kernel)."""
    n_chain, n_node, C, _ = weights.shape
    N, Cx, H, W = x_nchw.shape
    x = jnp.transpose(x_nchw, (0, 2, 3, 1)).reshape(N * H * W, Cx)
    states = [x]                                # n_input = 1
    for c in range(n_chain):
        h = states[0]                           # ReplicateAllocator
        for lvl in range(n_node):               # nn.Sequential of 1x1conv+ReLU
            h = jnp.maximum(
                jnp.dot(h.astype(jnp.bfloat16),
                        weights[c, lvl].astype(jnp.bfloat16),
                        preferred_element_type=jnp.float32),
                0.0)
        states.append(h)
    out = jnp.concatenate(states[1:], axis=-1).astype(out_dtype)  # ConcatMerger
    return out.reshape(N, H, W, n_chain * C).transpose(0, 3, 1, 2)


if __name__ == "__main__":
    key = jax.random.PRNGKey(0)
    kx, kw = jax.random.split(key)

    # Small NCHW input; chn_in = chn_out = 64, 2 chains of depth 2, so the
    # concatenated output has 128 channels and each image has H*W = 256 lanes.
    N, C, H, W = 2, 64, 16, 16
    N_CHAIN, N_CHAIN_NODES = 2, 2

    x = jax.random.normal(kx, (N, C, H, W), dtype=jnp.float32)
    weights = (jax.random.normal(
        kw, (N_CHAIN, N_CHAIN_NODES, C, C), dtype=jnp.float32)
        * (1.0 / jnp.sqrt(C)))

    w0_t, wbd_t = pack_weights(weights)          # once per model, outside the jit
    out = jax.block_until_ready(multi_chain_forward_nchw(x, w0_t, wbd_t))

    ref = multi_chain_reference(x, weights)
    assert out.shape == (N, N_CHAIN * C, H, W), out.shape
    assert out.dtype == jnp.bfloat16, out.dtype
    assert jnp.allclose(out.astype(jnp.float32), ref.astype(jnp.float32),
                        atol=2e-2, rtol=2e-2), "mismatch vs reference"

    print("KERNEL_OK")
</pallas_src>

<mosaic_0001>
module attributes {stable_mosaic.version = 11 : i64} {
  func.func @multi_chain_kernel(%arg0: i32, %arg1: i32, %arg2: memref<1x64x256xf32, #tpu.memory_space<vmem>>, %arg3: memref<128x64xbf16, #tpu.memory_space<vmem>>, %arg4: memref<1x128x128xbf16, #tpu.memory_space<vmem>>, %arg5: memref<1x128x256xbf16, #tpu.memory_space<vmem>>) attributes {dimension_semantics = [#tpu.dimension_semantics<parallel>, #tpu.dimension_semantics<parallel>], iteration_bounds = array<i64: 2, 1>, scalar_prefetch = 0 : i64, scratch_operands = 0 : i64, tpu.core_type = #tpu.core_type<tc>, window_params = [{transform_indices = @transform_0, window_bounds = array<i64: 1, 64, 256>}, {pipeline_mode = #tpu.pipeline_mode<synchronous>, transform_indices = @transform_1, window_bounds = array<i64: 128, 64>}, {pipeline_mode = #tpu.pipeline_mode<synchronous>, transform_indices = @transform_2, window_bounds = array<i64: 1, 128, 128>}, {transform_indices = @transform_3, window_bounds = array<i64: 1, 128, 256>}]} {
    %c0 = arith.constant 0 : index
    %c0_0 = arith.constant 0 : index
    %c0_1 = arith.constant 0 : index
    %0 = vector.load %arg2[%c0, %c0_0, %c0_1] : memref<1x64x256xf32, #tpu.memory_space<vmem>>, vector<1x64x256xf32>
    %1 = vector.shape_cast %0 : vector<1x64x256xf32> to vector<64x256xf32>
    %2 = arith.truncf %1 : vector<64x256xf32> to vector<64x256xbf16>
    %c0_2 = arith.constant 0 : index
    %c0_3 = arith.constant 0 : index
    %3 = vector.load %arg3[%c0_2, %c0_3] : memref<128x64xbf16, #tpu.memory_space<vmem>>, vector<128x64xbf16>
    %cst = arith.constant dense<0.000000e+00> : vector<128x256xf32>
    %4 = tpu.matmul %3, %2, %cst {dimension_numbers = #tpu.dot_dimension_numbers<[1], [0], [0], [1], [0, 0, 1, 1], [], []>} : vector<128x64xbf16>, vector<64x256xbf16>, vector<128x256xf32> -> vector<128x256xf32>
    %5 = arith.truncf %4 : vector<128x256xf32> to vector<128x256xbf16>
    %cst_4 = arith.constant 0.000000e+00 : bf16
    %6 = vector.broadcast %cst_4 : bf16 to vector<128x256xbf16>
    %7 = arith.maximumf %5, %6 : vector<128x256xbf16>
    %c0_5 = arith.constant 0 : index
    %c0_6 = arith.constant 0 : index
    %c0_7 = arith.constant 0 : index
    %8 = vector.load %arg4[%c0_5, %c0_6, %c0_7] : memref<1x128x128xbf16, #tpu.memory_space<vmem>>, vector<1x128x128xbf16>
    %9 = vector.shape_cast %8 : vector<1x128x128xbf16> to vector<128x128xbf16>
    %cst_8 = arith.constant dense<0.000000e+00> : vector<128x256xf32>
    %10 = tpu.matmul %9, %7, %cst_8 {dimension_numbers = #tpu.dot_dimension_numbers<[1], [0], [0], [1], [0, 0, 1, 1], [], []>} : vector<128x128xbf16>, vector<128x256xbf16>, vector<128x256xf32> -> vector<128x256xf32>
    %11 = arith.truncf %10 : vector<128x256xf32> to vector<128x256xbf16>
    %cst_9 = arith.constant 0.000000e+00 : bf16
    %12 = vector.broadcast %cst_9 : bf16 to vector<128x256xbf16>
    %13 = arith.maximumf %11, %12 : vector<128x256xbf16>
    %c0_10 = arith.constant 0 : index
    %c0_11 = arith.constant 0 : index
    %c0_12 = arith.constant 0 : index
    %14 = vector.load %arg5[%c0_10, %c0_11, %c0_12] : memref<1x128x256xbf16, #tpu.memory_space<vmem>>, vector<1x128x256xbf16>
    %15 = vector.shape_cast %14 : vector<1x128x256xbf16> to vector<128x256xbf16>
    %16 = vector.shape_cast %13 : vector<128x256xbf16> to vector<1x128x256xbf16>
    tpu.vector_store %arg5[%c0_10, %c0_11, %c0_12], %16 {strides = array<i32>} : memref<1x128x256xbf16, #tpu.memory_space<vmem>>, vector<1x128x256xbf16>,
    return
  }
  func.func @transform_0(%arg0: i32, %arg1: i32) -> (i32, i32, i32) {
    %c0_i32 = arith.constant 0 : i32
    %c0_i32_0 = arith.constant 0 : i32
    return %arg0, %c0_i32, %arg1 : i32, i32, i32
  }
  func.func @transform_1(%arg0: i32, %arg1: i32) -> (i32, i32) {
    %c0_i32 = arith.constant 0 : i32
    %c0_i32_0 = arith.constant 0 : i32
    %c0_i32_1 = arith.constant 0 : i32
    return %c0_i32, %c0_i32_0 : i32, i32
  }
  func.func @transform_2(%arg0: i32, %arg1: i32) -> (i32, i32, i32) {
    %c0_i32 = arith.constant 0 : i32
    %c0_i32_0 = arith.constant 0 : i32
    %c0_i32_1 = arith.constant 0 : i32
    %c0_i32_2 = arith.constant 0 : i32
    return %c0_i32, %c0_i32_0, %c0_i32_1 : i32, i32, i32
  }
  func.func @transform_3(%arg0: i32, %arg1: i32) -> (i32, i32, i32) {
    %c0_i32 = arith.constant 0 : i32
    %c0_i32_0 = arith.constant 0 : i32
    return %arg0, %c0_i32, %arg1 : i32, i32, i32
  }
}

</mosaic_0001>

<llo_original>
// kernel: multi_chain_forward_nchw.1
$region0: #{multi_chain_forward_nchw.1}
  #allocation0 [shape = 'u32[]', space=smem, size = 0x4, offset = 0x4, fixed_abs, tag = 'smem constant byte address 0x4 - core index']
  #allocation1 [shape = 'u32[72,128]{1,0:T(1,128)}', space=vmem, size = 0x9000, scoped, tag = 'internal scratch']
  %s0 = inlined_call_operand.vmem [shape: f32[2,64,256], index: 0, kind: input, shape index: {}]
  %s1 = inlined_call_operand.vmem [shape: bf16[128,64], index: 1, kind: input, shape index: {}]
  %s2 = inlined_call_operand.vmem [shape: bf16[1,128,128], index: 2, kind: input, shape index: {}]
  %s3 = inlined_call_operand.vmem [shape: bf16[2,128,256], index: 3, kind: output, shape index: {}]
  %s4 = sld [smem:[#allocation0]]
  $region45: #{multi_chain_forward_nchw.1} parent=0
    _
  %s6 = ssub.s32 1, %s4
  %s7 = scalar_select 0, %s6, %s4
  loop: start=0, step=1, limit=4
  $region2: #{multi_chain_forward_nchw.1} parent=0 // loop_pre_header
    _
  $region3: #{multi_chain_forward_nchw.1} parent=0 // loop_header
    %s9 = sphi 0, %s13
    %p10 = scmp.ge.s32.totalorder %s9, 4
    %s16 = sphi 0, %s28
    %s17 = sphi 0, %s24
    %s18 = sphi 0, %s16
    %s19 = sphi 0, %s17
    %s20 = sphi 0, %s18
    %s21 = sphi 0, %s19
    %s33 = sphi 0, %s35
    %s36 = sphi 0, %s33
    %s37 = sphi 0, %s36
    %s53 = sphi 0, %s37
    %s57 = sphi 0, %s57
    %s59 = sphi 0, %s57
    %s60 = sphi 0, %s59
    %s74 = sphi 0, %s60
    %s78 = sphi 0, %s78
    %s80 = sphi 0, %s78
    %s81 = sphi 0, %s80
    %s95 = sphi 0, %s81
    %s103 = sphi 0, %s105
    %s106 = sphi 0, %s103
    %s107 = sphi 0, %s106
    %s123 = sphi 0, %s107
  $region4: #{multi_chain_forward_nchw.1} parent=0 // loop_header_branch
    %12 = sbr.rel (%p10) target = $region8
  $region5: #{multi_chain_forward_nchw.1} parent=0 // loop_body
    %s14 = ssub.s32 %s9, 1
    %s15 = ssub.s32 %s9, 2
    %s22 = sadd.s32 1, %s17
    %p23 = scmp.ge.s32.totalorder %s22, 1
    %s24 = scalar_select %p23, 0, %s22
    %s25 = sadd.s32 1, %s16
    %s26 = scalar_select %p23, %s25, %s16
    %p27 = scmp.ge.s32.totalorder %s26, 2
    %s28 = scalar_select %p27, 0, %s26
    %s29 = ssub.s32 %s16, %s28
    %s30 = ssub.s32 %s17, %s24
    %s31 = sor.u32 %s29, %s30
    %p32 = scmp.eq.s32.totalorder %s31, 0
    %s34 = sadd.s32 %s33, 1
    %s35 = scalar_select %p32, %s33, %s34
    %p38 = pneg %p32
    %p39 = scmp.eq.s32.totalorder %s9, 1
    %p40 = por %p38, %p39
    %p41 = scmp.ne.s32.totalorder %s33, %s36
    %p42 = scmp.eq.s32.totalorder %s9, 0
    %p43 = por %p41, %p42
    %p44 = scmp.ne.s32.totalorder %s33, %s36
    %p45 = scmp.eq.s32.totalorder %s14, 1
    %p46 = por %p44, %p45
    %p47 = scmp.ne.s32.totalorder %s36, %s37
    %p48 = scmp.eq.s32.totalorder %s14, 0
    %p49 = por %p47, %p48
    %p50 = scmp.ne.s32.totalorder %s36, %s37
    %p51 = scmp.eq.s32.totalorder %s15, 1
    %p52 = por %p50, %p51
    %p54 = scmp.ne.s32.totalorder %s37, %s53
    %p55 = scmp.eq.s32.totalorder %s15, 0
    %p56 = por %p54, %p55
    %s58 = sadd.s32 %s57, 1
    %p61 = scmp.eq.s32.totalorder %s9, 1
    %p62 = scmp.ne.s32.totalorder %s57, %s59
    %p63 = scmp.eq.s32.totalorder %s9, 0
    %p64 = por %p62, %p63
    %p65 = scmp.ne.s32.totalorder %s57, %s59
    %p66 = scmp.eq.s32.totalorder %s14, 1
    %p67 = por %p65, %p66
    %p68 = scmp.ne.s32.totalorder %s59, %s60
    %p69 = scmp.eq.s32.totalorder %s14, 0
    %p70 = por %p68, %p69
    %p71 = scmp.ne.s32.totalorder %s59, %s60
    %p72 = scmp.eq.s32.totalorder %s15, 1
    %p73 = por %p71, %p72
    %p75 = scmp.ne.s32.totalorder %s60, %s74
    %p76 = scmp.eq.s32.totalorder %s15, 0
    %p77 = por %p75, %p76
    %s79 = sadd.s32 %s78, 1
    %p82 = scmp.eq.s32.totalorder %s9, 1
    %p83 = scmp.ne.s32.totalorder %s78, %s80
    %p84 = scmp.eq.s32.totalorder %s9, 0
    %p85 = por %p83, %p84
    %p86 = scmp.ne.s32.totalorder %s78, %s80
    %p87 = scmp.eq.s32.totalorder %s14, 1
    %p88 = por %p86, %p87
    %p89 = scmp.ne.s32.totalorder %s80, %s81
    %p90 = scmp.eq.s32.totalorder %s14, 0
    %p91 = por %p89, %p90
    %p92 = scmp.ne.s32.totalorder %s80, %s81
    %p93 = scmp.eq.s32.totalorder %s15, 1
    %p94 = por %p92, %p93
    %p96 = scmp.ne.s32.totalorder %s81, %s95
    %p97 = scmp.eq.s32.totalorder %s15, 0
    %p98 = por %p96, %p97
    %s99 = ssub.s32 %s16, %s28
    %s100 = ssub.s32 %s17, %s24
    %s101 = sor.u32 %s99, %s100
    %p102 = scmp.eq.s32.totalorder %s101, 0
    %s104 = sadd.s32 %s103, 1
    %s105 = scalar_select %p102, %s103, %s104
    %p108 = pneg %p102
    %p109 = scmp.eq.s32.totalorder %s9, 1
    %p110 = por %p108, %p109
    %p111 = scmp.ne.s32.totalorder %s103, %s106
    %p112 = scmp.eq.s32.totalorder %s9, 0
    %p113 = por %p111, %p112
    %p114 = scmp.ne.s32.totalorder %s103, %s106
    %p115 = scmp.eq.s32.totalorder %s14, 1
    %p116 = por %p114, %p115
    %p117 = scmp.ne.s32.totalorder %s106, %s107
    %p118 = scmp.eq.s32.totalorder %s14, 0
    %p119 = por %p117, %p118
    %p120 = scmp.ne.s32.totalorder %s106, %s107
    %p121 = scmp.eq.s32.totalorder %s15, 1
    %p122 = por %p120, %p121
    %p124 = scmp.ne.s32.totalorder %s107, %s123
    %p125 = scmp.eq.s32.totalorder %s15, 0
    %p126 = por %p124, %p125
    %p127 = scmp.le.s32.totalorder 1, %s9
    %p128 = scmp.lt.s32.totalorder %s9, 3
    %p129 = pnand %p127, %p128
    %p130 = pneg %p129
    // Predicated region
    $region9: #{multi_chain_forward_nchw.1} parent=5 // pred_check
      _
    $region10: #{multi_chain_forward_nchw.1} parent=5 // pred_check_branch
      %132 = sbr.rel (%p129) target = $region12
    $region11: #{multi_chain_forward_nchw.1} parent=5 // pred_region
      %s133 = ssub.s32 %s9, 1
      // Predicated region
      $region13: #{multi_chain_forward_nchw.1} parent=11 // pred_check
        %p134 = pneg %p70
      $region14: #{multi_chain_forward_nchw.1} parent=11 // pred_check_branch
        %136 = sbr.rel (%p134) target = $region16
      $region15: #{multi_chain_forward_nchw.1} parent=11 // pred_region
        _
      $region16: #{multi_chain_forward_nchw.1} parent=11 // pred_fallthru
        _
      // Predicated region
      $region17: #{multi_chain_forward_nchw.1} parent=11 // pred_check
        %p137 = pneg %p91
      $region18: #{multi_chain_forward_nchw.1} parent=11 // pred_check_branch
        %139 = sbr.rel (%p137) target = $region20
      $region19: #{multi_chain_forward_nchw.1} parent=11 // pred_region
        _
      $region20: #{multi_chain_forward_nchw.1} parent=11 // pred_fallthru
        _
    $region12: #{multi_chain_forward_nchw.1} parent=5 // pred_fallthru
      _
    %p140 = scmp.lt.s32.totalorder %s9, 2
    // Predicated region
    $region21: #{multi_chain_forward_nchw.1} parent=5 // pred_check
      %p141 = pneg %p140
    $region22: #{multi_chain_forward_nchw.1} parent=5 // pred_check_branch
      %143 = sbr.rel (%p141) target = $region24
    $region23: #{multi_chain_forward_nchw.1} parent=5 // pred_region
      // Predicated region
      $region25: #{multi_chain_forward_nchw.1} parent=23 // pred_check
        %p144 = pneg %p43
      $region26: #{multi_chain_forward_nchw.1} parent=23 // pred_check_branch
        %146 = sbr.rel (%p144) target = $region28
      $region27: #{multi_chain_forward_nchw.1} parent=23 // pred_region
        %s147 = smul.u32 2, %s17
        %p148 = scmp.lt.s32.totalorder %s16, 1
        %s149 = scalar_select %p148, %s16, 1
        %p150 = scmp.lt.s32.totalorder %s147, 1
        %s151 = scalar_select %p150, %s147, 1
        %s152 = smul.addr %s149, 16
        %s153 = sadd.s32 %s151, %s152
        %s154 = smul.addr %s153, 8
        %s155 = scalar_lea.vmem %s0, %s154
        %s156 = smul.u32 2, %s17
      $region28: #{multi_chain_forward_nchw.1} parent=23 // pred_fallthru
        _
    $region24: #{multi_chain_forward_nchw.1} parent=5 // pred_fallthru
      _
    %p157 = scmp.le.s32.totalorder 1, %s9
    %p158 = scmp.lt.s32.totalorder %s9, 3
    %p159 = pnand %p157, %p158
    %p160 = pneg %p159
    // Predicated region
    $region29: #{multi_chain_forward_nchw.1} parent=5 // pred_check
      _
    $region30: #{multi_chain_forward_nchw.1} parent=5 // pred_check_branch
      %162 = sbr.rel (%p159) target = $region32
    $region31: #{multi_chain_forward_nchw.1} parent=5 // pred_region
      %s163 = ssub.s32 %s9, 1
      %s164 = smul.u32 2, %s19
      %p165 = scmp.lt.s32.totalorder %s18, 1
      %s166 = scalar_select %p165, %s18, 1
      %p167 = scmp.lt.s32.totalorder %s164, 1
      %s168 = scalar_select %p167, %s164, 1
      %s169 = smul.addr %s166, 16
      %s170 = sadd.s32 %s168, %s169
      %s171 = smul.addr %s170, 8
      %s172 = scalar_lea.vmem %s0, %s171
      %p173 = pneg %p49
      %p174 = pneg %p46
      %p175 = pneg %p70
      %p176 = pneg %p67
      %p177 = pneg %p91
      %p178 = pneg %p88
      %p179 = pneg %p119
      %p180 = pneg %p116
      %s181 = smul.u32 2, %s19
      %p182 = scmp.lt.s32.totalorder %s18, 1
      %s183 = scalar_select %p182, %s18, 1
      %p184 = scmp.lt.s32.totalorder %s181, 1
      %s185 = scalar_select %p184, %s181, 1
      %s186 = smul.addr %s183, 32
      %s187 = sadd.s32 %s185, %s186
      %s188 = smul.addr %s187, 4
      %s189 = scalar_lea.vmem %s3, %s188
      %s190 = smul.u32 2, %s19
      %p191 = scmp.lt.s32.totalorder %s18, 1
      %s192 = scalar_select %p191, %s18, 1
      %p193 = scmp.lt.s32.totalorder %s190, 1
      %s194 = scalar_select %p193, %s190, 1
      %s195 = smul.addr %s192, 16
      %s196 = sadd.s32 %s194, %s195
      %s197 = smul.addr %s196, 8
      %s198 = scalar_lea.vmem %s0, %s197
      %s199 = smul.u32 2, %s19
      %s200 = smul.u32 2, %s19
      %p201 = scmp.lt.s32.totalorder %s18, 1
      %s202 = scalar_select %p201, %s18, 1
      %p203 = scmp.lt.s32.totalorder %s200, 1
      %s204 = scalar_select %p203, %s200, 1
      %s205 = smul.addr %s202, 32
      %s206 = sadd.s32 %s204, %s205
      %s207 = smul.addr %s206, 4
      %s208 = scalar_lea.vmem %s3, %s207
      %s209 = smul.u32 2, %s19
      %v211 = vld [vmem:[%s198] sm:$0xff]
      %v212 = vld [vmem:[%s198 + $0x8] sm:$0xff]
      %v213 = vld [vmem:[%s198 + $0x10] sm:$0xff]
      %v214 = vld [vmem:[%s198 + $0x18] sm:$0xff]
      %v215 = vld [vmem:[%s198 + $0x20] sm:$0xff]
      %v216 = vld [vmem:[%s198 + $0x28] sm:$0xff]
      %v217 = vld [vmem:[%s198 + $0x30] sm:$0xff]
      %v218 = vld [vmem:[%s198 + $0x38] sm:$0xff]
      %v219 = vld [vmem:[%s198 + $0x40] sm:$0xff]
      %v220 = vld [vmem:[%s198 + $0x48] sm:$0xff]
      %v221 = vld [vmem:[%s198 + $0x50] sm:$0xff]
      %v222 = vld [vmem:[%s198 + $0x58] sm:$0xff]
      %v223 = vld [vmem:[%s198 + $0x60] sm:$0xff]
      %v224 = vld [vmem:[%s198 + $0x68] sm:$0xff]
      %v225 = vld [vmem:[%s198 + $0x70] sm:$0xff]
      %v226 = vld [vmem:[%s198 + $0x78] sm:$0xff]
      %v227 = vpack.c.bf16 %v213, %v211
      %v228 = vpack.c.bf16 %v214, %v212
      %v229 = vpack.c.bf16 %v217, %v215
      %v230 = vpack.c.bf16 %v218, %v216
      %v231 = vpack.c.bf16 %v221, %v219
      %v232 = vpack.c.bf16 %v222, %v220
      %v233 = vpack.c.bf16 %v225, %v223
      %v234 = vpack.c.bf16 %v226, %v224
      %v235 = vld [vmem:[%s1] sm:$0xf]
      %v236 = vld [vmem:[%s1 + $0x4] sm:$0xf]
      %v237 = vld [vmem:[%s1 + $0x8] sm:$0xf]
      %v238 = vld [vmem:[%s1 + $0xc] sm:$0xf]
      %v239 = vld [vmem:[%s1 + $0x10] sm:$0xf]
      %v240 = vld [vmem:[%s1 + $0x14] sm:$0xf]
      %v241 = vld [vmem:[%s1 + $0x18] sm:$0xf]
      %v242 = vld [vmem:[%s1 + $0x1c] sm:$0xf]
      %v243 = vld [vmem:[%s1 + $0x20] sm:$0xf]
      %v244 = vld [vmem:[%s1 + $0x24] sm:$0xf]
      %v245 = vld [vmem:[%s1 + $0x28] sm:$0xf]
      %v246 = vld [vmem:[%s1 + $0x2c] sm:$0xf]
      %v247 = vld [vmem:[%s1 + $0x30] sm:$0xf]
      %v248 = vld [vmem:[%s1 + $0x34] sm:$0xf]
      %v249 = vld [vmem:[%s1 + $0x38] sm:$0xf]
      %v250 = vld [vmem:[%s1 + $0x3c] sm:$0xf]
      %v267 = vunpack.c.l.b16 %v235
      %v268 = vunpack.c.l.b16 %v236
      %v269 = vunpack.c.l.b16 %v237
      %v270 = vunpack.c.l.b16 %v238
      %v271 = vunpack.c.l.b16 %v239
      %v272 = vunpack.c.l.b16 %v240
      %v273 = vunpack.c.l.b16 %v241
      %v274 = vunpack.c.l.b16 %v242
      %v275 = vunpack.c.l.b16 %v243
      %v276 = vunpack.c.l.b16 %v244
      %v277 = vunpack.c.l.b16 %v245
      %v278 = vunpack.c.l.b16 %v246
      %v279 = vunpack.c.l.b16 %v247
      %v280 = vunpack.c.l.b16 %v248
      %v281 = vunpack.c.l.b16 %v249
      %v282 = vunpack.c.l.b16 %v250
      %v283 = vpack.c.b16 %v268, %v267
      %v284 = vpack.c.b16 %v270, %v269
      %v285 = vpack.c.b16 %v272, %v271
      %v286 = vpack.c.b16 %v274, %v273
      %v287 = vpack.c.b16 %v276, %v275
      %v288 = vpack.c.b16 %v278, %v277
      %v289 = vpack.c.b16 %v280, %v279
      %v290 = vpack.c.b16 %v282, %v281
      %vm291 = vcmask 523264
      %v293 = vsel %vm291, %v283, 0
      %v296 = vsel %vm291, %v284, 0
      %v299 = vsel %vm291, %v285, 0
      %v302 = vsel %vm291, %v286, 0
      %v305 = vsel %vm291, %v287, 0
      %v308 = vsel %vm291, %v288, 0
      %v311 = vsel %vm291, %v289, 0
      %v314 = vsel %vm291, %v290, 0
      %316 = vmatpush.bf16.msra.mxu0 0
      %317 = vmatpush.bf16.msra.mxu0 0
      %318 = vmatpush.bf16.msra.mxu0 0
      %319 = vmatpush.bf16.msra.mxu0 0
      %320 = vmatpush.bf16.msra.mxu0 %v233
      %321 = vmatpush.bf16.msra.mxu0 %v231
      %322 = vmatpush.bf16.msra.mxu0 %v229
      %323 = vmatpush.bf16.msra.mxu0 %v227
      %324 = vmatmul.bf16.gmra.mxu0 %v293
      %v325 = vpop.f32.mrf.mxu0
      %v326 = vadd.f32 0.0, %v325
      %v327 = vpop.f32.mrf.mxu0
      %v328 = vadd.f32 0.0, %v327
      %329 = vmatmul.bf16.gmra.mxu0 %v296
      %v330 = vpop.f32.mrf.mxu0
      %v331 = vadd.f32 0.0, %v330
      %v332 = vpop.f32.mrf.mxu0
      %v333 = vadd.f32 0.0, %v332
      %334 = vmatmul.bf16.gmra.mxu0 %v299
      %v335 = vpop.f32.mrf.mxu0
      %v336 = vadd.f32 0.0, %v335
      %v337 = vpop.f32.mrf.mxu0
      %v338 = vadd.f32 0.0, %v337
      %339 = vmatmul.bf16.gmra.mxu0 %v302
      %v340 = vpop.f32.mrf.mxu0
      %v341 = vadd.f32 0.0, %v340
      %v342 = vpop.f32.mrf.mxu0
      %v343 = vadd.f32 0.0, %v342
      %344 = vmatmul.bf16.gmra.mxu0 %v305
      %v345 = vpop.f32.mrf.mxu0
      %v346 = vadd.f32 0.0, %v345
      %v347 = vpop.f32.mrf.mxu0
      %v348 = vadd.f32 0.0, %v347
      %349 = vmatmul.bf16.gmra.mxu0 %v308
      %v350 = vpop.f32.mrf.mxu0
      %v351 = vadd.f32 0.0, %v350
      %v352 = vpop.f32.mrf.mxu0
      %v353 = vadd.f32 0.0, %v352
      %354 = vmatmul.bf16.gmra.mxu0 %v311
      %v355 = vpop.f32.mrf.mxu0
      %v356 = vadd.f32 0.0, %v355
      %v357 = vpop.f32.mrf.mxu0
      %v358 = vadd.f32 0.0, %v357
      %359 = vmatmul.bf16.gmra.mxu0 %v314
      %v360 = vpop.f32.mrf.mxu0
      %v361 = vadd.f32 0.0, %v360
      %v362 = vpop.f32.mrf.mxu0
      %v363 = vadd.f32 0.0, %v362
      %364 = vdwg.mxu0
      %365 = vmatpush.bf16.msra.mxu0 0
      %366 = vmatpush.bf16.msra.mxu0 0
      %367 = vmatpush.bf16.msra.mxu0 0
      %368 = vmatpush.bf16.msra.mxu0 0
      %369 = vmatpush.bf16.msra.mxu0 %v234
      %370 = vmatpush.bf16.msra.mxu0 %v232
      %371 = vmatpush.bf16.msra.mxu0 %v230
      %372 = vmatpush.bf16.msra.mxu0 %v228
      %373 = vmatmul.bf16.gmra.mxu0 %v293
      %v374 = vpop.f32.mrf.mxu0
      %v375 = vadd.f32 0.0, %v374
      %v376 = vpop.f32.mrf.mxu0
      %v377 = vadd.f32 0.0, %v376
      %378 = vmatmul.bf16.gmra.mxu0 %v296
      %v379 = vpop.f32.mrf.mxu0
      %v380 = vadd.f32 0.0, %v379
      %v381 = vpop.f32.mrf.mxu0
      %v382 = vadd.f32 0.0, %v381
      %383 = vmatmul.bf16.gmra.mxu0 %v299
      %v384 = vpop.f32.mrf.mxu0
      %v385 = vadd.f32 0.0, %v384
      %v386 = vpop.f32.mrf.mxu0
      %v387 = vadd.f32 0.0, %v386
      %388 = vmatmul.bf16.gmra.mxu0 %v302
      %v389 = vpop.f32.mrf.mxu0
      %v390 = vadd.f32 0.0, %v389
      %v391 = vpop.f32.mrf.mxu0
      %v392 = vadd.f32 0.0, %v391
      %393 = vmatmul.bf16.gmra.mxu0 %v305
      %v394 = vpop.f32.mrf.mxu0
      %v395 = vadd.f32 0.0, %v394
      %v396 = vpop.f32.mrf.mxu0
      %v397 = vadd.f32 0.0, %v396
      %398 = vmatmul.bf16.gmra.mxu0 %v308
      %v399 = vpop.f32.mrf.mxu0
      %v400 = vadd.f32 0.0, %v399
      %v401 = vpop.f32.mrf.mxu0
      %v402 = vadd.f32 0.0, %v401
      %403 = vmatmul.bf16.gmra.mxu0 %v311
      %v404 = vpop.f32.mrf.mxu0
      %v405 = vadd.f32 0.0, %v404
      %v406 = vpop.f32.mrf.mxu0
      %v407 = vadd.f32 0.0, %v406
      %408 = vmatmul.bf16.gmra.mxu0 %v314
      %v409 = vpop.f32.mrf.mxu0
      %v410 = vadd.f32 0.0, %v409
      %v411 = vpop.f32.mrf.mxu0
      %v412 = vadd.f32 0.0, %v411
      %413 = vdwg.mxu0
      %v414 = vpack.c.bf16 %v375, %v326
      %v415 = vpack.c.bf16 %v377, %v328
      %v416 = vpack.c.bf16 %v380, %v331
      %v417 = vpack.c.bf16 %v382, %v333
      %v418 = vpack.c.bf16 %v385, %v336
      %v419 = vpack.c.bf16 %v387, %v338
      %v420 = vpack.c.bf16 %v390, %v341
      %v421 = vpack.c.bf16 %v392, %v343
      %v422 = vpack.c.bf16 %v395, %v346
      %v423 = vpack.c.bf16 %v397, %v348
      %v424 = vpack.c.bf16 %v400, %v351
      %v425 = vpack.c.bf16 %v402, %v353
      %v426 = vpack.c.bf16 %v405, %v356
      %v427 = vpack.c.bf16 %v407, %v358
      %v428 = vpack.c.bf16 %v410, %v361
      %v429 = vpack.c.bf16 %v412, %v363
      %v430 = vunpack.c.l.bf16 %v414
      %v431 = vunpack.c.h.bf16 %v414
      %v432 = vunpack.c.l.bf16 %v415
      %v433 = vunpack.c.h.bf16 %v415
      %v434 = vunpack.c.l.bf16 %v416
      %v435 = vunpack.c.h.bf16 %v416
      %v436 = vunpack.c.l.bf16 %v417
      %v437 = vunpack.c.h.bf16 %v417
      %v438 = vunpack.c.l.bf16 %v418
      %v439 = vunpack.c.h.bf16 %v418
      %v440 = vunpack.c.l.bf16 %v419
      %v441 = vunpack.c.h.bf16 %v419
      %v442 = vunpack.c.l.bf16 %v420
      %v443 = vunpack.c.h.bf16 %v420
      %v444 = vunpack.c.l.bf16 %v421
      %v445 = vunpack.c.h.bf16 %v421
      %v446 = vunpack.c.l.bf16 %v422
      %v447 = vunpack.c.h.bf16 %v422
      %v448 = vunpack.c.l.bf16 %v423
      %v449 = vunpack.c.h.bf16 %v423
      %v450 = vunpack.c.l.bf16 %v424
      %v451 = vunpack.c.h.bf16 %v424
      %v452 = vunpack.c.l.bf16 %v425
      %v453 = vunpack.c.h.bf16 %v425
      %v454 = vunpack.c.l.bf16 %v426
      %v455 = vunpack.c.h.bf16 %v426
      %v456 = vunpack.c.l.bf16 %v427
      %v457 = vunpack.c.h.bf16 %v427
      %v458 = vunpack.c.l.bf16 %v428
      %v459 = vunpack.c.h.bf16 %v428
      %v460 = vunpack.c.l.bf16 %v429
      %v461 = vunpack.c.h.bf16 %v429
      %v462 = vmax.f32 %v430, 0.0
      %v463 = vmax.f32 %v431, 0.0
      %v464 = vmax.f32 %v432, 0.0
      %v465 = vmax.f32 %v433, 0.0
      %v466 = vmax.f32 %v434, 0.0
      %v467 = vmax.f32 %v435, 0.0
      %v468 = vmax.f32 %v436, 0.0
      %v469 = vmax.f32 %v437, 0.0
      %v470 = vmax.f32 %v438, 0.0
      %v471 = vmax.f32 %v439, 0.0
      %v472 = vmax.f32 %v440, 0.0
      %v473 = vmax.f32 %v441, 0.0
      %v474 = vmax.f32 %v442, 0.0
      %v475 = vmax.f32 %v443, 0.0
      %v476 = vmax.f32 %v444, 0.0
      %v477 = vmax.f32 %v445, 0.0
      %v478 = vmax.f32 %v446, 0.0
      %v479 = vmax.f32 %v447, 0.0
      %v480 = vmax.f32 %v448, 0.0
      %v481 = vmax.f32 %v449, 0.0
      %v482 = vmax.f32 %v450, 0.0
      %v483 = vmax.f32 %v451, 0.0
      %v484 = vmax.f32 %v452, 0.0
      %v485 = vmax.f32 %v453, 0.0
      %v486 = vmax.f32 %v454, 0.0
      %v487 = vmax.f32 %v455, 0.0
      %v488 = vmax.f32 %v456, 0.0
      %v489 = vmax.f32 %v457, 0.0
      %v490 = vmax.f32 %v458, 0.0
      %v491 = vmax.f32 %v459, 0.0
      %v492 = vmax.f32 %v460, 0.0
      %v493 = vmax.f32 %v461, 0.0
      %v494 = vpack.c.bf16 %v464, %v462
      %v495 = vpack.c.bf16 %v465, %v463
      %v496 = vpack.c.bf16 %v468, %v466
      %v497 = vpack.c.bf16 %v469, %v467
      %v498 = vpack.c.bf16 %v472, %v470
      %v499 = vpack.c.bf16 %v473, %v471
      %v500 = vpack.c.bf16 %v476, %v474
      %v501 = vpack.c.bf16 %v477, %v475
      %v502 = vpack.c.bf16 %v480, %v478
      %v503 = vpack.c.bf16 %v481, %v479
      %v504 = vpack.c.bf16 %v484, %v482
      %v505 = vpack.c.bf16 %v485, %v483
      %v506 = vpack.c.bf16 %v488, %v486
      %v507 = vpack.c.bf16 %v489, %v487
      %v508 = vpack.c.bf16 %v492, %v490
      %v509 = vpack.c.bf16 %v493, %v491
      %v510 = vld [vmem:[%s2] sm:$0xf]
      %v511 = vld [vmem:[%s2 + $0x4] sm:$0xf]
      %v512 = vld [vmem:[%s2 + $0x8] sm:$0xf]
      %v513 = vld [vmem:[%s2 + $0xc] sm:$0xf]
      %v514 = vld [vmem:[%s2 + $0x10] sm:$0xf]
      %v515 = vld [vmem:[%s2 + $0x14] sm:$0xf]
      %v516 = vld [vmem:[%s2 + $0x18] sm:$0xf]
      %v517 = vld [vmem:[%s2 + $0x1c] sm:$0xf]
      %v518 = vld [vmem:[%s2 + $0x20] sm:$0xf]
      %v519 = vld [vmem:[%s2 + $0x24] sm:$0xf]
      %v520 = vld [vmem:[%s2 + $0x28] sm:$0xf]
      %v521 = vld [vmem:[%s2 + $0x2c] sm:$0xf]
      %v522 = vld [vmem:[%s2 + $0x30] sm:$0xf]
      %v523 = vld [vmem:[%s2 + $0x34] sm:$0xf]
      %v524 = vld [vmem:[%s2 + $0x38] sm:$0xf]
      %v525 = vld [vmem:[%s2 + $0x3c] sm:$0xf]
      %v542 = vunpack.c.l.b16 %v510
      %v543 = vunpack.c.l.b16 %v511
      %v544 = vunpack.c.l.b16 %v512
      %v545 = vunpack.c.l.b16 %v513
      %v546 = vunpack.c.l.b16 %v514
      %v547 = vunpack.c.l.b16 %v515
      %v548 = vunpack.c.l.b16 %v516
      %v549 = vunpack.c.l.b16 %v517
      %v550 = vunpack.c.l.b16 %v518
      %v551 = vunpack.c.l.b16 %v519
      %v552 = vunpack.c.l.b16 %v520
      %v553 = vunpack.c.l.b16 %v521
      %v554 = vunpack.c.l.b16 %v522
      %v555 = vunpack.c.l.b16 %v523
      %v556 = vunpack.c.l.b16 %v524
      %v557 = vunpack.c.l.b16 %v525
      %v558 = vpack.c.b16 %v543, %v542
      %v559 = vpack.c.b16 %v545, %v544
      %v560 = vpack.c.b16 %v547, %v546
      %v561 = vpack.c.b16 %v549, %v548
      %v562 = vpack.c.b16 %v551, %v550
      %v563 = vpack.c.b16 %v553, %v552
      %v564 = vpack.c.b16 %v555, %v554
      %v565 = vpack.c.b16 %v557, %v556
      %574 = vmatpush.bf16.msra.mxu0 %v508
      %575 = vmatpush.bf16.msra.mxu0 %v506
      %576 = vmatpush.bf16.msra.mxu0 %v504
      %577 = vmatpush.bf16.msra.mxu0 %v502
      %578 = vmatpush.bf16.msra.mxu0 %v500
      %579 = vmatpush.bf16.msra.mxu0 %v498
      %580 = vmatpush.bf16.msra.mxu0 %v496
      %581 = vmatpush.bf16.msra.mxu0 %v494
      %582 = vmatmul.bf16.gmra.mxu0 %v558
      %v583 = vpop.f32.mrf.mxu0
      %v584 = vadd.f32 0.0, %v583
      %v585 = vpop.f32.mrf.mxu0
      %v586 = vadd.f32 0.0, %v585
      %587 = vmatmul.bf16.gmra.mxu0 %v559
      %v588 = vpop.f32.mrf.mxu0
      %v589 = vadd.f32 0.0, %v588
      %v590 = vpop.f32.mrf.mxu0
      %v591 = vadd.f32 0.0, %v590
      %592 = vmatmul.bf16.gmra.mxu0 %v560
      %v593 = vpop.f32.mrf.mxu0
      %v594 = vadd.f32 0.0, %v593
      %v595 = vpop.f32.mrf.mxu0
      %v596 = vadd.f32 0.0, %v595
      %597 = vmatmul.bf16.gmra.mxu0 %v561
      %v598 = vpop.f32.mrf.mxu0
      %v599 = vadd.f32 0.0, %v598
      %v600 = vpop.f32.mrf.mxu0
      %v601 = vadd.f32 0.0, %v600
      %602 = vmatmul.bf16.gmra.mxu0 %v562
      %v603 = vpop.f32.mrf.mxu0
      %v604 = vadd.f32 0.0, %v603
      %v605 = vpop.f32.mrf.mxu0
      %v606 = vadd.f32 0.0, %v605
      %607 = vmatmul.bf16.gmra.mxu0 %v563
      %v608 = vpop.f32.mrf.mxu0
      %v609 = vadd.f32 0.0, %v608
      %v610 = vpop.f32.mrf.mxu0
      %v611 = vadd.f32 0.0, %v610
      %612 = vmatmul.bf16.gmra.mxu0 %v564
      %v613 = vpop.f32.mrf.mxu0
      %v614 = vadd.f32 0.0, %v613
      %v615 = vpop.f32.mrf.mxu0
      %v616 = vadd.f32 0.0, %v615
      %617 = vmatmul.bf16.gmra.mxu0 %v565
      %v618 = vpop.f32.mrf.mxu0
      %v619 = vadd.f32 0.0, %v618
      %v620 = vpop.f32.mrf.mxu0
      %v621 = vadd.f32 0.0, %v620
      %622 = vdwg.mxu0
      %623 = vmatpush.bf16.msra.mxu0 %v509
      %624 = vmatpush.bf16.msra.mxu0 %v507
      %625 = vmatpush.bf16.msra.mxu0 %v505
      %626 = vmatpush.bf16.msra.mxu0 %v503
      %627 = vmatpush.bf16.msra.mxu0 %v501
      %628 = vmatpush.bf16.msra.mxu0 %v499
      %629 = vmatpush.bf16.msra.mxu0 %v497
      %630 = vmatpush.bf16.msra.mxu0 %v495
      %631 = vmatmul.bf16.gmra.mxu0 %v558
      %v632 = vpop.f32.mrf.mxu0
      %v633 = vadd.f32 0.0, %v632
      %v634 = vpop.f32.mrf.mxu0
      %v635 = vadd.f32 0.0, %v634
      %636 = vmatmul.bf16.gmra.mxu0 %v559
      %v637 = vpop.f32.mrf.mxu0
      %v638 = vadd.f32 0.0, %v637
      %v639 = vpop.f32.mrf.mxu0
      %v640 = vadd.f32 0.0, %v639
      %641 = vmatmul.bf16.gmra.mxu0 %v560
      %v642 = vpop.f32.mrf.mxu0
      %v643 = vadd.f32 0.0, %v642
      %v644 = vpop.f32.mrf.mxu0
      %v645 = vadd.f32 0.0, %v644
      %646 = vmatmul.bf16.gmra.mxu0 %v561
      %v647 = vpop.f32.mrf.mxu0
      %v648 = vadd.f32 0.0, %v647
      %v649 = vpop.f32.mrf.mxu0
      %v650 = vadd.f32 0.0, %v649
      %651 = vmatmul.bf16.gmra.mxu0 %v562
      %v652 = vpop.f32.mrf.mxu0
      %v653 = vadd.f32 0.0, %v652
      %v654 = vpop.f32.mrf.mxu0
      %v655 = vadd.f32 0.0, %v654
      %656 = vmatmul.bf16.gmra.mxu0 %v563
      %v657 = vpop.f32.mrf.mxu0
      %v658 = vadd.f32 0.0, %v657
      %v659 = vpop.f32.mrf.mxu0
      %v660 = vadd.f32 0.0, %v659
      %661 = vmatmul.bf16.gmra.mxu0 %v564
      %v662 = vpop.f32.mrf.mxu0
      %v663 = vadd.f32 0.0, %v662
      %v664 = vpop.f32.mrf.mxu0
      %v665 = vadd.f32 0.0, %v664
      %666 = vmatmul.bf16.gmra.mxu0 %v565
      %v667 = vpop.f32.mrf.mxu0
      %v668 = vadd.f32 0.0, %v667
      %v669 = vpop.f32.mrf.mxu0
      %v670 = vadd.f32 0.0, %v669
      %671 = vdwg.mxu0
      %v672 = vpack.c.bf16 %v633, %v584
      %v673 = vpack.c.bf16 %v635, %v586
      %v674 = vpack.c.bf16 %v638, %v589
      %v675 = vpack.c.bf16 %v640, %v591
      %v676 = vpack.c.bf16 %v643, %v594
      %v677 = vpack.c.bf16 %v645, %v596
      %v678 = vpack.c.bf16 %v648, %v599
      %v679 = vpack.c.bf16 %v650, %v601
      %v680 = vpack.c.bf16 %v653, %v604
      %v681 = vpack.c.bf16 %v655, %v606
      %v682 = vpack.c.bf16 %v658, %v609
      %v683 = vpack.c.bf16 %v660, %v611
      %v684 = vpack.c.bf16 %v663, %v614
      %v685 = vpack.c.bf16 %v665, %v616
      %v686 = vpack.c.bf16 %v668, %v619
      %v687 = vpack.c.bf16 %v670, %v621
      %v688 = vunpack.c.l.bf16 %v672
      %v689 = vunpack.c.h.bf16 %v672
      %v690 = vunpack.c.l.bf16 %v673
      %v691 = vunpack.c.h.bf16 %v673
      %v692 = vunpack.c.l.bf16 %v674
      %v693 = vunpack.c.h.bf16 %v674
      %v694 = vunpack.c.l.bf16 %v675
      %v695 = vunpack.c.h.bf16 %v675
      %v696 = vunpack.c.l.bf16 %v676
      %v697 = vunpack.c.h.bf16 %v676
      %v698 = vunpack.c.l.bf16 %v677
      %v699 = vunpack.c.h.bf16 %v677
      %v700 = vunpack.c.l.bf16 %v678
      %v701 = vunpack.c.h.bf16 %v678
      %v702 = vunpack.c.l.bf16 %v679
      %v703 = vunpack.c.h.bf16 %v679
      %v704 = vunpack.c.l.bf16 %v680
      %v705 = vunpack.c.h.bf16 %v680
      %v706 = vunpack.c.l.bf16 %v681
      %v707 = vunpack.c.h.bf16 %v681
      %v708 = vunpack.c.l.bf16 %v682
      %v709 = vunpack.c.h.bf16 %v682
      %v710 = vunpack.c.l.bf16 %v683
      %v711 = vunpack.c.h.bf16 %v683
      %v712 = vunpack.c.l.bf16 %v684
      %v713 = vunpack.c.h.bf16 %v684
      %v714 = vunpack.c.l.bf16 %v685
      %v715 = vunpack.c.h.bf16 %v685
      %v716 = vunpack.c.l.bf16 %v686
      %v717 = vunpack.c.h.bf16 %v686
      %v718 = vunpack.c.l.bf16 %v687
      %v719 = vunpack.c.h.bf16 %v687
      %v720 = vmax.f32 %v688, 0.0
      %v721 = vmax.f32 %v689, 0.0
      %v722 = vmax.f32 %v690, 0.0
      %v723 = vmax.f32 %v691, 0.0
      %v724 = vmax.f32 %v692, 0.0
      %v725 = vmax.f32 %v693, 0.0
      %v726 = vmax.f32 %v694, 0.0
      %v727 = vmax.f32 %v695, 0.0
      %v728 = vmax.f32 %v696, 0.0
      %v729 = vmax.f32 %v697, 0.0
      %v730 = vmax.f32 %v698, 0.0
      %v731 = vmax.f32 %v699, 0.0
      %v732 = vmax.f32 %v700, 0.0
      %v733 = vmax.f32 %v701, 0.0
      %v734 = vmax.f32 %v702, 0.0
      %v735 = vmax.f32 %v703, 0.0
      %v736 = vmax.f32 %v704, 0.0
      %v737 = vmax.f32 %v705, 0.0
      %v738 = vmax.f32 %v706, 0.0
      %v739 = vmax.f32 %v707, 0.0
      %v740 = vmax.f32 %v708, 0.0
      %v741 = vmax.f32 %v709, 0.0
      %v742 = vmax.f32 %v710, 0.0
      %v743 = vmax.f32 %v711, 0.0
      %v744 = vmax.f32 %v712, 0.0
      %v745 = vmax.f32 %v713, 0.0
      %v746 = vmax.f32 %v714, 0.0
      %v747 = vmax.f32 %v715, 0.0
      %v748 = vmax.f32 %v716, 0.0
      %v749 = vmax.f32 %v717, 0.0
      %v750 = vmax.f32 %v718, 0.0
      %v751 = vmax.f32 %v719, 0.0
      %v752 = vpack.c.bf16 %v721, %v720
      %v753 = vpack.c.bf16 %v723, %v722
      %v754 = vpack.c.bf16 %v725, %v724
      %v755 = vpack.c.bf16 %v727, %v726
      %v756 = vpack.c.bf16 %v729, %v728
      %v757 = vpack.c.bf16 %v731, %v730
      %v758 = vpack.c.bf16 %v733, %v732
      %v759 = vpack.c.bf16 %v735, %v734
      %v760 = vpack.c.bf16 %v737, %v736
      %v761 = vpack.c.bf16 %v739, %v738
      %v762 = vpack.c.bf16 %v741, %v740
      %v763 = vpack.c.bf16 %v743, %v742
      %v764 = vpack.c.bf16 %v745, %v744
      %v765 = vpack.c.bf16 %v747, %v746
      %v766 = vpack.c.bf16 %v749, %v748
      %v767 = vpack.c.bf16 %v751, %v750
      %768 = vst [vmem:[%s208] sm:$0xff] %v752
      %769 = vst [vmem:[%s208 + $0x8] sm:$0xff] %v753
      %770 = vst [vmem:[%s208 + $0x10] sm:$0xff] %v754
      %771 = vst [vmem:[%s208 + $0x18] sm:$0xff] %v755
      %772 = vst [vmem:[%s208 + $0x20] sm:$0xff] %v756
      %773 = vst [vmem:[%s208 + $0x28] sm:$0xff] %v757
      %774 = vst [vmem:[%s208 + $0x30] sm:$0xff] %v758
      %775 = vst [vmem:[%s208 + $0x38] sm:$0xff] %v759
      %776 = vst [vmem:[%s208 + $0x40] sm:$0xff] %v760
      %777 = vst [vmem:[%s208 + $0x48] sm:$0xff] %v761
      %778 = vst [vmem:[%s208 + $0x50] sm:$0xff] %v762
      %779 = vst [vmem:[%s208 + $0x58] sm:$0xff] %v763
      %780 = vst [vmem:[%s208 + $0x60] sm:$0xff] %v764
      %781 = vst [vmem:[%s208 + $0x68] sm:$0xff] %v765
      %782 = vst [vmem:[%s208 + $0x70] sm:$0xff] %v766
      %783 = vst [vmem:[%s208 + $0x78] sm:$0xff] %v767
      %s784 = smul.u32 2, %s19
      %p785 = scmp.lt.s32.totalorder %s18, 1
      %s786 = scalar_select %p785, %s18, 1
      %p787 = scmp.lt.s32.totalorder %s784, 1
      %s788 = scalar_select %p787, %s784, 1
      %s789 = smul.addr %s786, 32
      %s790 = sadd.s32 %s788, %s789
      %s791 = smul.addr %s790, 4
      %s792 = scalar_lea.vmem %s3, %s791
      // Predicated region
      $region33: #{multi_chain_forward_nchw.1} parent=31 // pred_check
        %p793 = pneg %p116
      $region34: #{multi_chain_forward_nchw.1} parent=31 // pred_check_branch
        %795 = sbr.rel (%p793) target = $region36
      $region35: #{multi_chain_forward_nchw.1} parent=31 // pred_region
        %s796 = smul.u32 2, %s19
      $region36: #{multi_chain_forward_nchw.1} parent=31 // pred_fallthru
        _
    $region32: #{multi_chain_forward_nchw.1} parent=5 // pred_fallthru
      _
    %p797 = scmp.le.s32.totalorder 2, %s9
    // Predicated region
    $region37: #{multi_chain_forward_nchw.1} parent=5 // pred_check
      %p798 = pneg %p797
    $region38: #{multi_chain_forward_nchw.1} parent=5 // pred_check_branch
      %800 = sbr.rel (%p798) target = $region40
    $region39: #{multi_chain_forward_nchw.1} parent=5 // pred_region
      %s801 = ssub.s32 %s9, 2
      // Predicated region
      $region41: #{multi_chain_forward_nchw.1} parent=39 // pred_check
        %p802 = pneg %p122
      $region42: #{multi_chain_forward_nchw.1} parent=39 // pred_check_branch
        %804 = sbr.rel (%p802) target = $region44
      $region43: #{multi_chain_forward_nchw.1} parent=39 // pred_region
        %s805 = smul.u32 2, %s21
        %p806 = scmp.lt.s32.totalorder %s20, 1
        %s807 = scalar_select %p806, %s20, 1
        %p808 = scmp.lt.s32.totalorder %s805, 1
        %s809 = scalar_select %p808, %s805, 1
        %s810 = smul.addr %s807, 32
        %s811 = sadd.s32 %s809, %s810
        %s812 = smul.addr %s811, 4
        %s813 = scalar_lea.vmem %s3, %s812
      $region44: #{multi_chain_forward_nchw.1} parent=39 // pred_fallthru
        _
    $region40: #{multi_chain_forward_nchw.1} parent=5 // pred_fallthru
      _
  $region6: #{multi_chain_forward_nchw.1} parent=0 // loop_footer
    %s13 = sadd.s32 1, %s9
  $region7: #{multi_chain_forward_nchw.1} parent=0 // loop_footer_branch
    %8 = sbr.rel target = $region3
  $region8: #{multi_chain_forward_nchw.1} parent=0 // loop_exit
    _

</llo_original>
